<compile_context>
chip_gen: v5e
topology: v5e:2x2
jax: 0.10.0
libtpu: 0.0.40
codegen_flags: <defaults>
</compile_context>

<pallas_src>
import jax
import jax.numpy as jnp
from jax.experimental import pallas as pl
from jax.experimental.pallas import tpu as pltpu


def _round_up(x, m):
    return ((x + m - 1) // m) * m


def _dgc_kernel(x_ref, w_ref, b_ref, o_ref):
    # One row tile: [TM, nfeat] @ [nfeat, nclass_pad] on the MXU, bias add on VPU.
    acc = jnp.dot(x_ref[...], w_ref[...], preferred_element_type=jnp.float32)
    o_ref[...] = (acc + b_ref[...]).astype(o_ref.dtype)


def dgc_forward(x, weight, bias, *, tm=1024, vmem_limit_bytes=64 * 1024 * 1024):
    """x: [N, nfeat], weight: [nclass, nfeat], bias: [nclass]  ->  [N, nclass]."""
    n, nfeat = x.shape
    nclass = weight.shape[0]
    dtype = x.dtype
    itemsize = jnp.dtype(dtype).itemsize

    # ---- lane-dense output: pad class dim up to a multiple of 128 ----------
    nclass_pad = _round_up(max(nclass, 1), 128)
    w_t = (
        jnp.zeros((nfeat, nclass_pad), dtype)
        .at[:, :nclass]
        .set(weight.T.astype(dtype))
    )
    b2d = jnp.zeros((1, nclass_pad), dtype).at[:, :nclass].set(bias.astype(dtype))

    # ---- row tiling over N --------------------------------------------------
    tm_eff = min(tm, _round_up(n, 8))
    tm_eff = _round_up(tm_eff, 8)
    n_pad = _round_up(n, tm_eff)
    x_p = x if n_pad == n else jnp.pad(x, ((0, n_pad - n), (0, 0)))
    grid = (n_pad // tm_eff,)

    cost = pl.CostEstimate(
        flops=2 * n_pad * nfeat * nclass_pad,
        transcendentals=0,
        bytes_accessed=itemsize
        * (n_pad * nfeat + nfeat * nclass_pad + n_pad * nclass_pad),
    )

    out_p = pl.pallas_call(
        _dgc_kernel,
        out_shape=jax.ShapeDtypeStruct((n_pad, nclass_pad), dtype),
        grid_spec=pltpu.PrefetchScalarGridSpec(
            num_scalar_prefetch=0,
            grid=grid,
            in_specs=[
                # x tile: (TM, nfeat), marches down the rows
                pl.BlockSpec((tm_eff, nfeat), lambda i: (i, 0)),
                # weight / bias: resident across all row tiles
                pl.BlockSpec((nfeat, nclass_pad), lambda i: (0, 0)),
                pl.BlockSpec((1, nclass_pad), lambda i: (0, 0)),
            ],
            out_specs=pl.BlockSpec((tm_eff, nclass_pad), lambda i: (i, 0)),
        ),
        compiler_params=pltpu.CompilerParams(
            dimension_semantics=("parallel",),  # megacore sharding on v7x
            vmem_limit_bytes=vmem_limit_bytes,
        ),
        cost_estimate=cost,
    )(x_p, w_t, b2d)

    # Strip row / class padding.
    return out_p[:n, :nclass]


if __name__ == "__main__":
    # Small deterministic example (mirrors DGC(nfeat, nclass).forward(x));
    # N=256 with tm=128 exercises a 2-step tiled grid.
    nfeat, nclass, n = 32, 8, 256
    key = jax.random.PRNGKey(0)
    kx, kw, kb = jax.random.split(key, 3)

    x = jax.random.normal(kx, (n, nfeat), dtype=jnp.float32)
    # nn.Linear-style init shapes: weight [nclass, nfeat], bias [nclass]
    bound = 1.0 / (nfeat ** 0.5)
    weight = jax.random.uniform(kw, (nclass, nfeat), jnp.float32, -bound, bound)
    bias = jax.random.uniform(kb, (nclass,), jnp.float32, -bound, bound)

    out = dgc_forward(x, weight, bias, tm=128)
    jax.block_until_ready(out)

    # Sanity check against plain JAX reference.
    ref = x @ weight.T + bias
    assert out.shape == (n, nclass)
    assert jnp.allclose(out, ref, atol=1e-5, rtol=1e-5)
    print("KERNEL_OK")
</pallas_src>

<mosaic_0001>
module attributes {stable_mosaic.version = 11 : i64} {
  func.func @_dgc_kernel(%arg0: i32, %arg1: memref<128x32xf32, #tpu.memory_space<vmem>>, %arg2: memref<32x128xf32, #tpu.memory_space<vmem>>, %arg3: memref<1x128xf32, #tpu.memory_space<vmem>>, %arg4: memref<128x128xf32, #tpu.memory_space<vmem>>) attributes {dimension_semantics = [#tpu.dimension_semantics<parallel>], iteration_bounds = array<i64: 2>, scalar_prefetch = 0 : i64, scratch_operands = 0 : i64, tpu.core_type = #tpu.core_type<tc>, window_params = [{transform_indices = @transform_0, window_bounds = array<i64: 128, 32>}, {pipeline_mode = #tpu.pipeline_mode<synchronous>, transform_indices = @transform_1, window_bounds = array<i64: 32, 128>}, {pipeline_mode = #tpu.pipeline_mode<synchronous>, transform_indices = @transform_2, window_bounds = array<i64: 1, 128>}, {transform_indices = @transform_3, window_bounds = array<i64: 128, 128>}]} {
    %c0 = arith.constant 0 : index
    %c0_0 = arith.constant 0 : index
    %0 = vector.load %arg1[%c0, %c0_0] : memref<128x32xf32, #tpu.memory_space<vmem>>, vector<128x32xf32>
    %c0_1 = arith.constant 0 : index
    %c0_2 = arith.constant 0 : index
    %1 = vector.load %arg2[%c0_1, %c0_2] : memref<32x128xf32, #tpu.memory_space<vmem>>, vector<32x128xf32>
    %cst = arith.constant dense<0.000000e+00> : vector<128x128xf32>
    %2 = tpu.matmul %0, %1, %cst {dimension_numbers = #tpu.dot_dimension_numbers<[1], [0], [0], [1], [0, 0, 1, 1], [], []>} : vector<128x32xf32>, vector<32x128xf32>, vector<128x128xf32> -> vector<128x128xf32>
    %c0_3 = arith.constant 0 : index
    %c0_4 = arith.constant 0 : index
    %3 = vector.load %arg3[%c0_3, %c0_4] : memref<1x128xf32, #tpu.memory_space<vmem>>, vector<1x128xf32>
    %4 = vector.broadcast %3 : vector<1x128xf32> to vector<128x128xf32>
    %5 = arith.addf %2, %4 : vector<128x128xf32>
    %c0_5 = arith.constant 0 : index
    %c0_6 = arith.constant 0 : index
    %6 = vector.load %arg4[%c0_5, %c0_6] : memref<128x128xf32, #tpu.memory_space<vmem>>, vector<128x128xf32>
    tpu.vector_store %arg4[%c0_5, %c0_6], %5 {strides = array<i32>} : memref<128x128xf32, #tpu.memory_space<vmem>>, vector<128x128xf32>,
    return
  }
  func.func @transform_0(%arg0: i32) -> (i32, i32) {
    %c0_i32 = arith.constant 0 : i32
    %c0_i32_0 = arith.constant 0 : i32
    return %arg0, %c0_i32 : i32, i32
  }
  func.func @transform_1(%arg0: i32) -> (i32, i32) {
    %c0_i32 = arith.constant 0 : i32
    %c0_i32_0 = arith.constant 0 : i32
    %c0_i32_1 = arith.constant 0 : i32
    return %c0_i32, %c0_i32_0 : i32, i32
  }
  func.func @transform_2(%arg0: i32) -> (i32, i32) {
    %c0_i32 = arith.constant 0 : i32
    %c0_i32_0 = arith.constant 0 : i32
    %c0_i32_1 = arith.constant 0 : i32
    return %c0_i32, %c0_i32_0 : i32, i32
  }
  func.func @transform_3(%arg0: i32) -> (i32, i32) {
    %c0_i32 = arith.constant 0 : i32
    %c0_i32_0 = arith.constant 0 : i32
    return %arg0, %c0_i32 : i32, i32
  }
}

</mosaic_0001>

<llo_original>
// kernel: tpu_custom_call.1
$region0: #{tpu_custom_call.1}
  #allocation0 [shape = 'u32[]', space=smem, size = 0x4, offset = 0x4, fixed_abs, tag = 'smem constant byte address 0x4 - core index']
  #allocation1 [shape = 'u32[72,128]{1,0:T(1,128)}', space=vmem, size = 0x9000, scoped, tag = 'internal scratch']
  %s0 = inlined_call_operand.vmem [shape: f32[256,32], index: 0, kind: input, shape index: {}]
  %s1 = inlined_call_operand.vmem [shape: f32[32,128], index: 1, kind: input, shape index: {}]
  %s2 = inlined_call_operand.vmem [shape: f32[1,128], index: 2, kind: input, shape index: {}]
  %s3 = inlined_call_operand.hbm [shape: f32[256,128], index: 3, kind: output, shape index: {}]
  %s4 = sld [smem:[#allocation0]]
  $region45: #{tpu_custom_call.1} parent=0
    _
  %s6 = ssub.s32 1, %s4
  %s7 = scalar_select 0, %s6, %s4
  $region1: #{tpu_custom_call.1} parent=0
    #allocation2 [shape = 'u8[131072]{0}', space=vmem, size = 0x20000, scoped, tag = 'output window, operand 0']
    #allocation3 [shape = 's32[2]{0}', space=sflag, size = 0x8, scoped, tag = 'scoped memory for tpu_custom_call.1']
    %8 = vsyncpa [#allocation3], 0
    %s9 = scalar_lea.sflag [#allocation3], 1
    %10 = vsyncpa %s9, 0
    loop: start=0, step=1, limit=4
    $region2: #{tpu_custom_call.1} parent=1 // loop_pre_header
      _
    $region3: #{tpu_custom_call.1} parent=1 // loop_header
      %s12 = sphi 0, %s16
      %p13 = scmp.ge.s32.totalorder %s12, 4
      %s22 = sphi 0, %s24
      %s25 = sphi 0, %s22
      %s26 = sphi 0, %s25
      %s42 = sphi 0, %s26
      %s46 = sphi 0, %s46
      %s48 = sphi 0, %s46
      %s49 = sphi 0, %s48
      %s63 = sphi 0, %s49
      %s67 = sphi 0, %s67
      %s69 = sphi 0, %s67
      %s70 = sphi 0, %s69
      %s84 = sphi 0, %s70
      %s90 = sphi 0, %s92
      %s93 = sphi 0, %s90
      %s94 = sphi 0, %s93
      %s110 = sphi 0, %s94
    $region4: #{tpu_custom_call.1} parent=1 // loop_header_branch
      %15 = sbr.rel (%p13) target = $region8
    $region5: #{tpu_custom_call.1} parent=1 // loop_body
      %s17 = ssub.s32 %s12, 1
      %s18 = ssub.s32 %s12, 2
      %s19 = sadd.s32 %s12, 1
      %s20 = ssub.s32 %s12, %s19
      %p21 = scmp.eq.s32.totalorder %s20, 0
      %s23 = sadd.s32 %s22, 1
      %s24 = scalar_select %p21, %s22, %s23
      %p27 = pneg %p21
      %p28 = scmp.eq.s32.totalorder %s12, 1
      %p29 = por %p27, %p28
      %p30 = scmp.ne.s32.totalorder %s22, %s25
      %p31 = scmp.eq.s32.totalorder %s12, 0
      %p32 = por %p30, %p31
      %p33 = scmp.ne.s32.totalorder %s22, %s25
      %p34 = scmp.eq.s32.totalorder %s17, 1
      %p35 = por %p33, %p34
      %p36 = scmp.ne.s32.totalorder %s25, %s26
      %p37 = scmp.eq.s32.totalorder %s17, 0
      %p38 = por %p36, %p37
      %p39 = scmp.ne.s32.totalorder %s25, %s26
      %p40 = scmp.eq.s32.totalorder %s18, 1
      %p41 = por %p39, %p40
      %p43 = scmp.ne.s32.totalorder %s26, %s42
      %p44 = scmp.eq.s32.totalorder %s18, 0
      %p45 = por %p43, %p44
      %s47 = sadd.s32 %s46, 1
      %p50 = scmp.eq.s32.totalorder %s12, 1
      %p51 = scmp.ne.s32.totalorder %s46, %s48
      %p52 = scmp.eq.s32.totalorder %s12, 0
      %p53 = por %p51, %p52
      %p54 = scmp.ne.s32.totalorder %s46, %s48
      %p55 = scmp.eq.s32.totalorder %s17, 1
      %p56 = por %p54, %p55
      %p57 = scmp.ne.s32.totalorder %s48, %s49
      %p58 = scmp.eq.s32.totalorder %s17, 0
      %p59 = por %p57, %p58
      %p60 = scmp.ne.s32.totalorder %s48, %s49
      %p61 = scmp.eq.s32.totalorder %s18, 1
      %p62 = por %p60, %p61
      %p64 = scmp.ne.s32.totalorder %s49, %s63
      %p65 = scmp.eq.s32.totalorder %s18, 0
      %p66 = por %p64, %p65
      %s68 = sadd.s32 %s67, 1
      %p71 = scmp.eq.s32.totalorder %s12, 1
      %p72 = scmp.ne.s32.totalorder %s67, %s69
      %p73 = scmp.eq.s32.totalorder %s12, 0
      %p74 = por %p72, %p73
      %p75 = scmp.ne.s32.totalorder %s67, %s69
      %p76 = scmp.eq.s32.totalorder %s17, 1
      %p77 = por %p75, %p76
      %p78 = scmp.ne.s32.totalorder %s69, %s70
      %p79 = scmp.eq.s32.totalorder %s17, 0
      %p80 = por %p78, %p79
      %p81 = scmp.ne.s32.totalorder %s69, %s70
      %p82 = scmp.eq.s32.totalorder %s18, 1
      %p83 = por %p81, %p82
      %p85 = scmp.ne.s32.totalorder %s70, %s84
      %p86 = scmp.eq.s32.totalorder %s18, 0
      %p87 = por %p85, %p86
      %s88 = ssub.s32 %s12, %s19
      %p89 = scmp.eq.s32.totalorder %s88, 0
      %s91 = sadd.s32 %s90, 1
      %s92 = scalar_select %p89, %s90, %s91
      %p95 = pneg %p89
      %p96 = scmp.eq.s32.totalorder %s12, 1
      %p97 = por %p95, %p96
      %p98 = scmp.ne.s32.totalorder %s90, %s93
      %p99 = scmp.eq.s32.totalorder %s12, 0
      %p100 = por %p98, %p99
      %p101 = scmp.ne.s32.totalorder %s90, %s93
      %p102 = scmp.eq.s32.totalorder %s17, 1
      %p103 = por %p101, %p102
      %p104 = scmp.ne.s32.totalorder %s93, %s94
      %p105 = scmp.eq.s32.totalorder %s17, 0
      %p106 = por %p104, %p105
      %p107 = scmp.ne.s32.totalorder %s93, %s94
      %p108 = scmp.eq.s32.totalorder %s18, 1
      %p109 = por %p107, %p108
      %p111 = scmp.ne.s32.totalorder %s94, %s110
      %p112 = scmp.eq.s32.totalorder %s18, 0
      %p113 = por %p111, %p112
      %p114 = scmp.le.s32.totalorder 1, %s12
      %p115 = scmp.lt.s32.totalorder %s12, 3
      %p116 = pnand %p114, %p115
      %p117 = pneg %p116
      // Predicated region
      $region9: #{tpu_custom_call.1} parent=5 // pred_check
        _
      $region10: #{tpu_custom_call.1} parent=5 // pred_check_branch
        %119 = sbr.rel (%p116) target = $region12
      $region11: #{tpu_custom_call.1} parent=5 // pred_region
        %s120 = ssub.s32 %s12, 1
        // Predicated region
        $region13: #{tpu_custom_call.1} parent=11 // pred_check
          %p121 = pneg %p59
        $region14: #{tpu_custom_call.1} parent=11 // pred_check_branch
          %123 = sbr.rel (%p121) target = $region16
        $region15: #{tpu_custom_call.1} parent=11 // pred_region
          _
        $region16: #{tpu_custom_call.1} parent=11 // pred_fallthru
          _
        // Predicated region
        $region17: #{tpu_custom_call.1} parent=11 // pred_check
          %p124 = pneg %p80
        $region18: #{tpu_custom_call.1} parent=11 // pred_check_branch
          %126 = sbr.rel (%p124) target = $region20
        $region19: #{tpu_custom_call.1} parent=11 // pred_region
          _
        $region20: #{tpu_custom_call.1} parent=11 // pred_fallthru
          _
      $region12: #{tpu_custom_call.1} parent=5 // pred_fallthru
        _
      %p127 = scmp.lt.s32.totalorder %s12, 2
      // Predicated region
      $region21: #{tpu_custom_call.1} parent=5 // pred_check
        %p128 = pneg %p127
      $region22: #{tpu_custom_call.1} parent=5 // pred_check_branch
        %130 = sbr.rel (%p128) target = $region24
      $region23: #{tpu_custom_call.1} parent=5 // pred_region
        // Predicated region
        $region25: #{tpu_custom_call.1} parent=23 // pred_check
          %p131 = pneg %p32
        $region26: #{tpu_custom_call.1} parent=23 // pred_check_branch
          %133 = sbr.rel (%p131) target = $region28
        $region27: #{tpu_custom_call.1} parent=23 // pred_region
          %s134 = smul.u32 16, %s12
          %p135 = scmp.lt.s32.totalorder %s134, 31
          %s136 = scalar_select %p135, %s134, 31
          %s137 = smul.addr %s136, 8
          %s138 = scalar_lea.vmem %s0, %s137
          %s139 = smul.u32 16, %s12
        $region28: #{tpu_custom_call.1} parent=23 // pred_fallthru
          _
      $region24: #{tpu_custom_call.1} parent=5 // pred_fallthru
        _
      %p140 = scmp.le.s32.totalorder 1, %s12
      %p141 = scmp.lt.s32.totalorder %s12, 3
      %p142 = pnand %p140, %p141
      %p143 = pneg %p142
      // Predicated region
      $region29: #{tpu_custom_call.1} parent=5 // pred_check
        _
      $region30: #{tpu_custom_call.1} parent=5 // pred_check_branch
        %145 = sbr.rel (%p142) target = $region32
      $region31: #{tpu_custom_call.1} parent=5 // pred_region
        %s146 = ssub.s32 %s12, 1
        %s147 = smul.u32 16, %s17
        %p148 = scmp.lt.s32.totalorder %s147, 31
        %s149 = scalar_select %p148, %s147, 31
        %s150 = smul.addr %s149, 8
        %s151 = scalar_lea.vmem %s0, %s150
        %p152 = pneg %p38
        %p153 = pneg %p35
        %p154 = pneg %p59
        %p155 = pneg %p56
        %p156 = pneg %p80
        %p157 = pneg %p77
        %p158 = pneg %p106
        %p159 = pneg %p103
        %s160 = sand.u32 %s93, 1
        %s161 = scalar_lea.sflag [#allocation3], %s160
        %s162 = sand.u32 %s93, 1
        %s163 = smul.addr %s162, 128
        %s164 = scalar_lea.vmem [#allocation2], %s163
        %s165 = smul.u32 16, %s17
        %p166 = scmp.lt.s32.totalorder %s165, 31
        %s167 = scalar_select %p166, %s165, 31
        %s168 = smul.addr %s167, 8
        %s169 = scalar_lea.vmem %s0, %s168
        %s170 = smul.u32 16, %s17
        %s171 = smul.u32 16, %s17
        %v172 = vld [vmem:[%s169] sm:$0xff]
        %v173 = vld [vmem:[%s169 + $0x8] sm:$0xff]
        %v174 = vld [vmem:[%s169 + $0x10] sm:$0xff]
        %v175 = vld [vmem:[%s169 + $0x18] sm:$0xff]
        %v176 = vld [vmem:[%s169 + $0x20] sm:$0xff]
        %v177 = vld [vmem:[%s169 + $0x28] sm:$0xff]
        %v178 = vld [vmem:[%s169 + $0x30] sm:$0xff]
        %v179 = vld [vmem:[%s169 + $0x38] sm:$0xff]
        %v180 = vld [vmem:[%s169 + $0x40] sm:$0xff]
        %v181 = vld [vmem:[%s169 + $0x48] sm:$0xff]
        %v182 = vld [vmem:[%s169 + $0x50] sm:$0xff]
        %v183 = vld [vmem:[%s169 + $0x58] sm:$0xff]
        %v184 = vld [vmem:[%s169 + $0x60] sm:$0xff]
        %v185 = vld [vmem:[%s169 + $0x68] sm:$0xff]
        %v186 = vld [vmem:[%s169 + $0x70] sm:$0xff]
        %v187 = vld [vmem:[%s169 + $0x78] sm:$0xff]
        %v188 = vld [vmem:[%s1] sm:$0xff]
        %v189 = vld [vmem:[%s1 + $0x8] sm:$0xff]
        %v190 = vld [vmem:[%s1 + $0x10] sm:$0xff]
        %v191 = vld [vmem:[%s1 + $0x18] sm:$0xff]
        %v192 = vld [vmem:[%s2] sm:$0x1]
        %v194 = vperm.slane %v192, 0
        %vm196 = vcmask 261120
        %v198 = vsel %vm196, %v172, 0
        %v201 = vsel %vm196, %v173, 0
        %v204 = vsel %vm196, %v174, 0
        %v207 = vsel %vm196, %v175, 0
        %v210 = vsel %vm196, %v176, 0
        %v213 = vsel %vm196, %v177, 0
        %v216 = vsel %vm196, %v178, 0
        %v219 = vsel %vm196, %v179, 0
        %v222 = vsel %vm196, %v180, 0
        %v225 = vsel %vm196, %v181, 0
        %v228 = vsel %vm196, %v182, 0
        %v231 = vsel %vm196, %v183, 0
        %v234 = vsel %vm196, %v184, 0
        %v237 = vsel %vm196, %v185, 0
        %v240 = vsel %vm196, %v186, 0
        %v243 = vsel %vm196, %v187, 0
        %245 = vmatpush.msra.mxu0 0.0
        %246 = vmatpush.msra.mxu0 0.0
        %247 = vmatpush.msra.mxu0 0.0
        %248 = vmatpush.msra.mxu0 0.0
        %249 = vmatpush.msra.mxu0 0.0
        %250 = vmatpush.msra.mxu0 0.0
        %251 = vmatpush.msra.mxu0 0.0
        %252 = vmatpush.msra.mxu0 0.0
        %253 = vmatpush.msra.mxu0 0.0
        %254 = vmatpush.msra.mxu0 0.0
        %255 = vmatpush.msra.mxu0 0.0
        %256 = vmatpush.msra.mxu0 0.0
        %257 = vmatpush.msra.mxu0 %v191
        %258 = vmatpush.msra.mxu0 %v190
        %259 = vmatpush.msra.mxu0 %v189
        %260 = vmatpush.msra.mxu0 %v188
        %261 = vmatmul.f32.gmra.mxu0 %v198
        %v262 = vpop.f32.mrf.mxu0
        %v263 = vadd.f32 %v194, %v262
        %264 = vmatmul.f32.gmra.mxu0 %v201
        %v265 = vpop.f32.mrf.mxu0
        %v266 = vadd.f32 %v194, %v265
        %267 = vmatmul.f32.gmra.mxu0 %v204
        %v268 = vpop.f32.mrf.mxu0
        %v269 = vadd.f32 %v194, %v268
        %270 = vmatmul.f32.gmra.mxu0 %v207
        %v271 = vpop.f32.mrf.mxu0
        %v272 = vadd.f32 %v194, %v271
        %273 = vmatmul.f32.gmra.mxu0 %v210
        %v274 = vpop.f32.mrf.mxu0
        %v275 = vadd.f32 %v194, %v274
        %276 = vmatmul.f32.gmra.mxu0 %v213
        %v277 = vpop.f32.mrf.mxu0
        %v278 = vadd.f32 %v194, %v277
        %279 = vmatmul.f32.gmra.mxu0 %v216
        %v280 = vpop.f32.mrf.mxu0
        %v281 = vadd.f32 %v194, %v280
        %282 = vmatmul.f32.gmra.mxu0 %v219
        %v283 = vpop.f32.mrf.mxu0
        %v284 = vadd.f32 %v194, %v283
        %285 = vmatmul.f32.gmra.mxu0 %v222
        %v286 = vpop.f32.mrf.mxu0
        %v287 = vadd.f32 %v194, %v286
        %288 = vmatmul.f32.gmra.mxu0 %v225
        %v289 = vpop.f32.mrf.mxu0
        %v290 = vadd.f32 %v194, %v289
        %291 = vmatmul.f32.gmra.mxu0 %v228
        %v292 = vpop.f32.mrf.mxu0
        %v293 = vadd.f32 %v194, %v292
        %294 = vmatmul.f32.gmra.mxu0 %v231
        %v295 = vpop.f32.mrf.mxu0
        %v296 = vadd.f32 %v194, %v295
        %297 = vmatmul.f32.gmra.mxu0 %v234
        %v298 = vpop.f32.mrf.mxu0
        %v299 = vadd.f32 %v194, %v298
        %300 = vmatmul.f32.gmra.mxu0 %v237
        %v301 = vpop.f32.mrf.mxu0
        %v302 = vadd.f32 %v194, %v301
        %303 = vmatmul.f32.gmra.mxu0 %v240
        %v304 = vpop.f32.mrf.mxu0
        %v305 = vadd.f32 %v194, %v304
        %306 = vmatmul.f32.gmra.mxu0 %v243
        %v307 = vpop.f32.mrf.mxu0
        %v308 = vadd.f32 %v194, %v307
        %309 = vdwg.mxu0
        %310 = vst [vmem:[%s164] sm:$0xff] %v263
        %311 = vst [vmem:[%s164 + $0x8] sm:$0xff] %v266
        %312 = vst [vmem:[%s164 + $0x10] sm:$0xff] %v269
        %313 = vst [vmem:[%s164 + $0x18] sm:$0xff] %v272
        %314 = vst [vmem:[%s164 + $0x20] sm:$0xff] %v275
        %315 = vst [vmem:[%s164 + $0x28] sm:$0xff] %v278
        %316 = vst [vmem:[%s164 + $0x30] sm:$0xff] %v281
        %317 = vst [vmem:[%s164 + $0x38] sm:$0xff] %v284
        %318 = vst [vmem:[%s164 + $0x40] sm:$0xff] %v287
        %319 = vst [vmem:[%s164 + $0x48] sm:$0xff] %v290
        %320 = vst [vmem:[%s164 + $0x50] sm:$0xff] %v293
        %321 = vst [vmem:[%s164 + $0x58] sm:$0xff] %v296
        %322 = vst [vmem:[%s164 + $0x60] sm:$0xff] %v299
        %323 = vst [vmem:[%s164 + $0x68] sm:$0xff] %v302
        %324 = vst [vmem:[%s164 + $0x70] sm:$0xff] %v305
        %325 = vst [vmem:[%s164 + $0x78] sm:$0xff] %v308
        %s326 = sand.u32 %s93, 1
        %s327 = scalar_lea.sflag [#allocation3], %s326
        %s328 = sand.u32 %s93, 1
        %s329 = smul.addr %s328, 128
        %s330 = scalar_lea.vmem [#allocation2], %s329
        // Predicated region
        $region33: #{tpu_custom_call.1} parent=31 // pred_check
          %p331 = pneg %p103
        $region34: #{tpu_custom_call.1} parent=31 // pred_check_branch
          %333 = sbr.rel (%p331) target = $region36
        $region35: #{tpu_custom_call.1} parent=31 // pred_region
          %s334 = smul.u32 16, %s17
          %336 = vsyncadd %s327, 0
          %s337 = smul.addr %s334, 8
          %s338 = scalar_lea.hbm %s3, %s337
          %s339 = sshll.u32 %s330, 4
          %s340 = int_to_ptr.vmem [resolvable:$true] %s339
          %s341 = sshll.u32 %s338, 4
          %s342 = int_to_ptr.hbm [resolvable:$true] %s341
          %347 = dma.vmem_to_hbm [thread:$0]  %s340, 2048, %s342, %s327, 128, 128, 8
        $region36: #{tpu_custom_call.1} parent=31 // pred_fallthru
          _
      $region32: #{tpu_custom_call.1} parent=5 // pred_fallthru
        _
      %p348 = scmp.le.s32.totalorder 2, %s12
      // Predicated region
      $region37: #{tpu_custom_call.1} parent=5 // pred_check
        %p349 = pneg %p348
      $region38: #{tpu_custom_call.1} parent=5 // pred_check_branch
        %351 = sbr.rel (%p349) target = $region40
      $region39: #{tpu_custom_call.1} parent=5 // pred_region
        %s352 = ssub.s32 %s12, 2
        // Predicated region
        $region41: #{tpu_custom_call.1} parent=39 // pred_check
          %p353 = pneg %p109
        $region42: #{tpu_custom_call.1} parent=39 // pred_check_branch
          %355 = sbr.rel (%p353) target = $region44
        $region43: #{tpu_custom_call.1} parent=39 // pred_region
          %s356 = sand.u32 %s94, 1
          %s357 = scalar_lea.sflag [#allocation3], %s356
          %s358 = sand.u32 %s94, 1
          %s359 = smul.addr %s358, 128
          %s360 = scalar_lea.vmem [#allocation2], %s359
          %362 = dma.done %s357, 2048
        $region44: #{tpu_custom_call.1} parent=39 // pred_fallthru
          _
      $region40: #{tpu_custom_call.1} parent=5 // pred_fallthru
        _
    $region6: #{tpu_custom_call.1} parent=1 // loop_footer
      %s16 = sadd.s32 1, %s12
    $region7: #{tpu_custom_call.1} parent=1 // loop_footer_branch
      %11 = sbr.rel target = $region3
    $region8: #{tpu_custom_call.1} parent=1 // loop_exit
      _
    %363 = vsyncpa [#allocation3], 1
    %s364 = scalar_lea.sflag [#allocation3], 1
    %365 = vsyncpa %s364, 1

</llo_original>
